<compile_context>
chip_gen: v7x
topology: tpu7x:2x2x1
jax: 0.10.0
libtpu: 0.0.40
codegen_flags: <defaults>
</compile_context>

<pallas_src>
import functools

import jax
import jax.numpy as jnp
from jax.experimental import pallas as pl
from jax.experimental.pallas import tpu as pltpu


def _round_up(x, m):
    return ((x + m - 1) // m) * m


def _cdiv(a, b):
    return -(-a // b)


# -----------------------------------------------------------------------------
# Kernel bodies.
# -----------------------------------------------------------------------------
def _group_conv1x1_kernel_2d(*refs, num_groups, feat_len):
    """Lane-dense path.  Ref layout (G = num_groups):
         refs[0:G]    x_refs : (TB, C_g * L)   VMEM  (flattened input slab)
         refs[G:2G]   w_refs : (O_g * C_g,)    SMEM  (flattened 1x1-conv weights)
         refs[2G:3G]  b_refs : (O_g,)          SMEM
         refs[3G:4G]  o_refs : (TB, O_g * L)   VMEM  (flattened output slab)
    """
    G = num_groups
    L = feat_len
    x_refs = refs[0:G]
    w_refs = refs[G:2 * G]
    b_refs = refs[2 * G:3 * G]
    o_refs = refs[3 * G:4 * G]

    for g in range(G):
        x_ref, w_ref, b_ref, o_ref = x_refs[g], w_refs[g], b_refs[g], o_refs[g]
        C = x_ref.shape[1] // L
        O = o_ref.shape[1] // L
        # out[t, o*L + l] = sum_c w[o, c] * x[t, c*L + l] + b[o]
        # C, O are tiny (hops per group / per-group filters): a VPU scalar-broadcast
        # weighted sum keeps every load AND store a static, aligned, lane-dense slab.
        for o in range(O):
            acc = w_ref[o * C + 0] * x_ref[:, pl.ds(0, L)]
            for c in range(1, C):
                acc = acc + w_ref[o * C + c] * x_ref[:, pl.ds(c * L, L)]
            acc = acc + b_ref[o]
            o_ref[:, pl.ds(o * L, L)] = acc.astype(o_ref.dtype)


def _group_conv1x1_kernel_3d(*refs, num_groups):
    """L-tiled fallback (huge L / many groups).  Ref layout:
         refs[0:G]    x_refs : (TB, C_g, TL)   VMEM
         refs[G:2G]   w_refs : (O_g * C_g,)    SMEM
         refs[2G:3G]  b_refs : (O_g,)          SMEM
         refs[3G:4G]  o_refs : (TB, O_g, TL)   VMEM
    """
    G = num_groups
    x_refs = refs[0:G]
    w_refs = refs[G:2 * G]
    b_refs = refs[2 * G:3 * G]
    o_refs = refs[3 * G:4 * G]

    for g in range(G):
        x_ref, w_ref, b_ref, o_ref = x_refs[g], w_refs[g], b_refs[g], o_refs[g]
        C = x_ref.shape[1]
        O = o_ref.shape[1]
        for o in range(O):
            acc = w_ref[o * C + 0] * x_ref[:, 0, :]
            for c in range(1, C):
                acc = acc + w_ref[o * C + c] * x_ref[:, c, :]
            acc = acc + b_ref[o]
            o_ref[:, o, :] = acc.astype(o_ref.dtype)


# -----------------------------------------------------------------------------
# Wrapper: one fused pallas_call for all groups.
# -----------------------------------------------------------------------------
def fused_group_conv1x1(x_list, w_list, b_list):
    """All-group 1x1 Conv1d + flatten.

    x_list[g]: (B, C_g, L) f32, w_list[g]: (O_g, C_g) f32, b_list[g]: (O_g,) f32
    returns list of (B, O_g * L) f32.
    """
    G = len(x_list)
    B = int(x_list[0].shape[0])
    L = int(x_list[0].shape[2])
    Cs = [int(x.shape[1]) for x in x_list]
    Os = [int(w.shape[0]) for w in w_list]
    dtype = x_list[0].dtype
    itemsize = jnp.dtype(dtype).itemsize

    # Flat 1-D weights -> compact SMEM (2-D SMEM pads to [8,128]-word tiles).
    w_flat = [w.reshape(-1) for w in w_list]

    # ---- generation-aware VMEM budgeting --------------------------------------
    try:
        vmem_cap = int(pltpu.get_tpu_info().vmem_capacity_bytes)
    except Exception:  # conservative fallback (v7x per-core VMEM)
        vmem_cap = 64 << 20
    block_cap = min(8 << 20, vmem_cap // 8)   # per-step block bytes (before 2x buffering)

    # Bytes moved per batch row across all groups (inputs + flattened outputs).
    row_bytes = itemsize * L * (sum(Cs) + sum(Os))

    tb_min = B if B <= 8 else 8
    # If even the smallest batch tile (double-buffered) would eat ~half of VMEM,
    # switch to the L-tiled fallback path.
    use_l_tiling = (2 * tb_min * row_bytes) > (vmem_cap // 2)

    if not use_l_tiling:
        # ---------------- 2-D lane-dense path (common case) --------------------
        if B <= 8:
            tb = B                              # block == full batch dim
        else:
            max_tb = (B // 8) * 8
            tb = (block_cap // max(row_bytes, 1)) // 8 * 8
            tb = max(8, min(tb, 512, max_tb))
            # >= 4 steps when batch allows -> >= 2 steps per v7x TensorCore so the
            # next-block DMA overlaps compute; >= 2 steps suffices for v5e/v6e.
            target_steps = 4 if B >= 64 else (2 if B >= 16 else 1)
            if _cdiv(B, tb) < target_steps:
                tb = max(8, min(max_tb, _round_up(_cdiv(B, target_steps), 8)))
        grid = (_cdiv(B, tb),)

        # Present each group as a lane-dense (B, C*L) slab (contiguous reshape).
        xs_in = [x_list[g].reshape(B, Cs[g] * L) for g in range(G)]

        in_specs = (
            [pl.BlockSpec((tb, Cs[g] * L), lambda i: (i, 0)) for g in range(G)]
            + [pl.BlockSpec(memory_space=pltpu.MemorySpace.SMEM) for _ in range(2 * G)]
        )
        out_specs = [pl.BlockSpec((tb, Os[g] * L), lambda i: (i, 0)) for g in range(G)]
        out_shape = [jax.ShapeDtypeStruct((B, Os[g] * L), dtype) for g in range(G)]

        per_step_bytes = itemsize * sum(
            _round_up(tb, 8) * (_round_up(Cs[g] * L, 128) + _round_up(Os[g] * L, 128))
            for g in range(G))
        kernel = functools.partial(_group_conv1x1_kernel_2d, num_groups=G, feat_len=L)
        dim_sem = ("parallel",)
        reshape_out = False
    else:
        # ---------------- 3-D fallback: tile the feature axis L ----------------
        tb = tb_min
        # Sublane-padded per-row footprint (C, O pad to 8 sublanes in 3-D blocks).
        padded_rows = sum(_round_up(c, 8) for c in Cs) + sum(_round_up(o, 8) for o in Os)
        tl = (block_cap // max(tb * padded_rows * itemsize, 1)) // 128 * 128
        tl = max(128, tl)
        if tl >= L:
            tl = L
        grid = (_cdiv(B, tb), _cdiv(L, tl))

        xs_in = list(x_list)
        in_specs = (
            [pl.BlockSpec((tb, Cs[g], tl), lambda i, j: (i, 0, j)) for g in range(G)]
            + [pl.BlockSpec(memory_space=pltpu.MemorySpace.SMEM) for _ in range(2 * G)]
        )
        out_specs = [pl.BlockSpec((tb, Os[g], tl), lambda i, j: (i, 0, j)) for g in range(G)]
        out_shape = [jax.ShapeDtypeStruct((B, Os[g], L), dtype) for g in range(G)]

        per_step_bytes = itemsize * _round_up(tb, 8) * padded_rows * _round_up(tl, 128)
        kernel = functools.partial(_group_conv1x1_kernel_3d, num_groups=G)
        dim_sem = ("parallel", "parallel")
        reshape_out = True

    # Explicit scoped-VMEM limit: 2x (double-buffered) working set + margin, clamped
    # below the physical capacity of the current generation.
    vmem_needed = 2 * per_step_bytes + (4 << 20)
    vmem_limit = int(min(int(vmem_cap * 0.9), max(vmem_needed, 32 << 20)))

    flops = sum(2 * B * Os[g] * Cs[g] * L for g in range(G))
    bytes_accessed = sum(
        itemsize * B * L * (Cs[g] + Os[g]) + 4 * (Os[g] * Cs[g] + Os[g])
        for g in range(G))

    fused = pl.pallas_call(
        kernel,
        out_shape=out_shape,
        grid_spec=pltpu.PrefetchScalarGridSpec(
            num_scalar_prefetch=0,
            grid=grid,
            in_specs=in_specs,
            out_specs=out_specs,
        ),
        compiler_params=pltpu.CompilerParams(
            dimension_semantics=dim_sem,
            vmem_limit_bytes=vmem_limit,
        ),
        cost_estimate=pl.CostEstimate(
            flops=flops, transcendentals=0, bytes_accessed=bytes_accessed),
    )
    outs = list(fused(*xs_in, *w_flat, *b_list))
    if reshape_out:
        outs = [o.reshape(B, -1) for o in outs]
    return outs


# -----------------------------------------------------------------------------
# GroupEncoders: parameter setup (plain JAX) + fused Pallas forward.
# -----------------------------------------------------------------------------
class GroupEncodersPallas:
    def __init__(self, filters_list, drop_rate, input_shape, key):
        # input_shape: list of group shapes, each (B, group_size, L)
        # TODO(synk): drop_rate is stored but never applied in GroupEncoders.forward.
        self.drop_rate = drop_rate
        self.filters_list = filters_list
        self.group_sizes = [int(gs[1]) for gs in input_shape]
        num_groups = len(input_shape)
        self.real_filters_list = [self._get_real_filters(i) for i in range(num_groups)]
        self.weights, self.biases = [], []
        for i in range(num_groups):
            c_in = self.group_sizes[i]
            c_out = self.real_filters_list[i]
            key, sub = jax.random.split(key)
            # xavier_normal_ on Conv1d weight of shape (c_out, c_in, 1):
            # fan_in = c_in * 1, fan_out = c_out * 1, std = sqrt(2/(fan_in+fan_out))
            std = (2.0 / (c_in + c_out)) ** 0.5
            self.weights.append(
                std * jax.random.normal(sub, (c_out, c_in), dtype=jnp.float32))
            self.biases.append(jnp.zeros((c_out,), dtype=jnp.float32))

    def _get_real_filters(self, i):
        if self.group_sizes[i] == 1:
            return 1
        elif isinstance(self.filters_list, list):
            return self.filters_list[i]
        else:
            return self.filters_list

    def __call__(self, x_group_list):
        # One fused Pallas launch for all groups; outputs already flattened (B, O*L).
        return fused_group_conv1x1(x_group_list, self.weights, self.biases)


# -----------------------------------------------------------------------------
# Pure-JAX reference for correctness check.
# -----------------------------------------------------------------------------
def _ref_forward(weights, biases, x_group_list):
    outs = []
    for w, b, x in zip(weights, biases, x_group_list):
        y = jnp.einsum("oc,bcl->bol", w, x) + b[None, :, None]
        outs.append(y.reshape(y.shape[0], -1))
    return outs


if __name__ == "__main__":
    key = jax.random.PRNGKey(0)

    # 3 groups with different hop counts (group sizes), feature length L=128.
    L = 128
    group_sizes = [4, 3, 1]          # third group has size 1 -> real_filters forced to 1
    filters_list = [8, 6, 5]         # per-group target filters

    # B=6  -> single full-batch block (block dim == array dim).
    # B=20 -> ragged last batch block (tb=16, cdiv grid), checks the no-pad path.
    for B in (6, 20):
        input_shape = [(B, gs, L) for gs in group_sizes]
        key, pkey = jax.random.split(key)
        model = GroupEncodersPallas(filters_list, drop_rate=0.5,
                                    input_shape=input_shape, key=pkey)

        x_group_list = []
        for gs in group_sizes:
            key, sub = jax.random.split(key)
            x_group_list.append(jax.random.normal(sub, (B, gs, L), dtype=jnp.float32))

        outs = model(x_group_list)
        outs = [jax.block_until_ready(o) for o in outs]

        refs = _ref_forward(model.weights, model.biases, x_group_list)
        for o, r, rf in zip(outs, refs, model.real_filters_list):
            assert o.shape == (B, rf * L), (o.shape, (B, rf * L))
            assert jnp.allclose(o, r, atol=1e-5, rtol=1e-5), "mismatch vs reference"

    print("KERNEL_OK")
</pallas_src>

<mosaic_0001>
module attributes {stable_mosaic.version = 11 : i64} {
  func.func @_group_conv1x1_kernel_2d(%arg0: i32, %arg1: memref<6x512xf32, #tpu.memory_space<vmem>>, %arg2: memref<6x384xf32, #tpu.memory_space<vmem>>, %arg3: memref<6x128xf32, #tpu.memory_space<vmem>>, %arg4: memref<32xf32, #tpu.memory_space<smem>>, %arg5: memref<18xf32, #tpu.memory_space<smem>>, %arg6: memref<1xf32, #tpu.memory_space<smem>>, %arg7: memref<8xf32, #tpu.memory_space<smem>>, %arg8: memref<6xf32, #tpu.memory_space<smem>>, %arg9: memref<1xf32, #tpu.memory_space<smem>>, %arg10: memref<6x1024xf32, #tpu.memory_space<vmem>>, %arg11: memref<6x768xf32, #tpu.memory_space<vmem>>, %arg12: memref<6x128xf32, #tpu.memory_space<vmem>>) attributes {dimension_semantics = [#tpu.dimension_semantics<parallel>], iteration_bounds = array<i64: 1>, scalar_prefetch = 0 : i64, scratch_operands = 0 : i64, tpu.core_type = #tpu.core_type<tc>, window_params = [{transform_indices = @transform_0, window_bounds = array<i64: 6, 512>}, {transform_indices = @transform_1, window_bounds = array<i64: 6, 384>}, {transform_indices = @transform_2, window_bounds = array<i64: 6, 128>}, {transform_indices = @transform_3, window_bounds = array<i64: 32>}, {transform_indices = @transform_4, window_bounds = array<i64: 18>}, {transform_indices = @transform_5, window_bounds = array<i64: 1>}, {transform_indices = @transform_6, window_bounds = array<i64: 8>}, {transform_indices = @transform_7, window_bounds = array<i64: 6>}, {transform_indices = @transform_8, window_bounds = array<i64: 1>}, {transform_indices = @transform_9, window_bounds = array<i64: 6, 1024>}, {transform_indices = @transform_10, window_bounds = array<i64: 6, 768>}, {transform_indices = @transform_11, window_bounds = array<i64: 6, 128>}]} {
    %c0 = arith.constant 0 : index
    %0 = memref.load %arg4[%c0] : memref<32xf32, #tpu.memory_space<smem>>
    %c0_0 = arith.constant 0 : index
    %c0_1 = arith.constant 0 : index
    %1 = vector.load %arg1[%c0_0, %c0_1] : memref<6x512xf32, #tpu.memory_space<vmem>>, vector<6x128xf32>
    %2 = vector.broadcast %0 : f32 to vector<6x128xf32>
    %3 = arith.mulf %2, %1 : vector<6x128xf32>
    %c1 = arith.constant 1 : index
    %4 = memref.load %arg4[%c1] : memref<32xf32, #tpu.memory_space<smem>>
    %c0_2 = arith.constant 0 : index
    %c128 = arith.constant 128 : index
    %5 = vector.load %arg1[%c0_2, %c128] : memref<6x512xf32, #tpu.memory_space<vmem>>, vector<6x128xf32>
    %6 = vector.broadcast %4 : f32 to vector<6x128xf32>
    %7 = arith.mulf %6, %5 : vector<6x128xf32>
    %8 = arith.addf %3, %7 : vector<6x128xf32>
    %c2 = arith.constant 2 : index
    %9 = memref.load %arg4[%c2] : memref<32xf32, #tpu.memory_space<smem>>
    %c0_3 = arith.constant 0 : index
    %c256 = arith.constant 256 : index
    %10 = vector.load %arg1[%c0_3, %c256] : memref<6x512xf32, #tpu.memory_space<vmem>>, vector<6x128xf32>
    %11 = vector.broadcast %9 : f32 to vector<6x128xf32>
    %12 = arith.mulf %11, %10 : vector<6x128xf32>
    %13 = arith.addf %8, %12 : vector<6x128xf32>
    %c3 = arith.constant 3 : index
    %14 = memref.load %arg4[%c3] : memref<32xf32, #tpu.memory_space<smem>>
    %c0_4 = arith.constant 0 : index
    %c384 = arith.constant 384 : index
    %15 = vector.load %arg1[%c0_4, %c384] : memref<6x512xf32, #tpu.memory_space<vmem>>, vector<6x128xf32>
    %16 = vector.broadcast %14 : f32 to vector<6x128xf32>
    %17 = arith.mulf %16, %15 : vector<6x128xf32>
    %18 = arith.addf %13, %17 : vector<6x128xf32>
    %c0_5 = arith.constant 0 : index
    %19 = memref.load %arg7[%c0_5] : memref<8xf32, #tpu.memory_space<smem>>
    %20 = vector.broadcast %19 : f32 to vector<6x128xf32>
    %21 = arith.addf %18, %20 : vector<6x128xf32>
    %c0_6 = arith.constant 0 : index
    %c0_7 = arith.constant 0 : index
    %22 = vector.load %arg10[%c0_6, %c0_7] : memref<6x1024xf32, #tpu.memory_space<vmem>>, vector<6x128xf32>
    tpu.vector_store %arg10[%c0_6, %c0_7], %21 {strides = array<i32>} : memref<6x1024xf32, #tpu.memory_space<vmem>>, vector<6x128xf32>,
    %c4 = arith.constant 4 : index
    %23 = memref.load %arg4[%c4] : memref<32xf32, #tpu.memory_space<smem>>
    %c0_8 = arith.constant 0 : index
    %c0_9 = arith.constant 0 : index
    %24 = vector.load %arg1[%c0_8, %c0_9] : memref<6x512xf32, #tpu.memory_space<vmem>>, vector<6x128xf32>
    %25 = vector.broadcast %23 : f32 to vector<6x128xf32>
    %26 = arith.mulf %25, %24 : vector<6x128xf32>
    %c5 = arith.constant 5 : index
    %27 = memref.load %arg4[%c5] : memref<32xf32, #tpu.memory_space<smem>>
    %c0_10 = arith.constant 0 : index
    %c128_11 = arith.constant 128 : index
    %28 = vector.load %arg1[%c0_10, %c128_11] : memref<6x512xf32, #tpu.memory_space<vmem>>, vector<6x128xf32>
    %29 = vector.broadcast %27 : f32 to vector<6x128xf32>
    %30 = arith.mulf %29, %28 : vector<6x128xf32>
    %31 = arith.addf %26, %30 : vector<6x128xf32>
    %c6 = arith.constant 6 : index
    %32 = memref.load %arg4[%c6] : memref<32xf32, #tpu.memory_space<smem>>
    %c0_12 = arith.constant 0 : index
    %c256_13 = arith.constant 256 : index
    %33 = vector.load %arg1[%c0_12, %c256_13] : memref<6x512xf32, #tpu.memory_space<vmem>>, vector<6x128xf32>
    %34 = vector.broadcast %32 : f32 to vector<6x128xf32>
    %35 = arith.mulf %34, %33 : vector<6x128xf32>
    %36 = arith.addf %31, %35 : vector<6x128xf32>
    %c7 = arith.constant 7 : index
    %37 = memref.load %arg4[%c7] : memref<32xf32, #tpu.memory_space<smem>>
    %c0_14 = arith.constant 0 : index
    %c384_15 = arith.constant 384 : index
    %38 = vector.load %arg1[%c0_14, %c384_15] : memref<6x512xf32, #tpu.memory_space<vmem>>, vector<6x128xf32>
    %39 = vector.broadcast %37 : f32 to vector<6x128xf32>
    %40 = arith.mulf %39, %38 : vector<6x128xf32>
    %41 = arith.addf %36, %40 : vector<6x128xf32>
    %c1_16 = arith.constant 1 : index
    %42 = memref.load %arg7[%c1_16] : memref<8xf32, #tpu.memory_space<smem>>
    %43 = vector.broadcast %42 : f32 to vector<6x128xf32>
    %44 = arith.addf %41, %43 : vector<6x128xf32>
    %c0_17 = arith.constant 0 : index
    %c128_18 = arith.constant 128 : index
    %45 = vector.load %arg10[%c0_17, %c128_18] : memref<6x1024xf32, #tpu.memory_space<vmem>>, vector<6x128xf32>
    tpu.vector_store %arg10[%c0_17, %c128_18], %44 {strides = array<i32>} : memref<6x1024xf32, #tpu.memory_space<vmem>>, vector<6x128xf32>,
    %c8 = arith.constant 8 : index
    %46 = memref.load %arg4[%c8] : memref<32xf32, #tpu.memory_space<smem>>
    %c0_19 = arith.constant 0 : index
    %c0_20 = arith.constant 0 : index
    %47 = vector.load %arg1[%c0_19, %c0_20] : memref<6x512xf32, #tpu.memory_space<vmem>>, vector<6x128xf32>
    %48 = vector.broadcast %46 : f32 to vector<6x128xf32>
    %49 = arith.mulf %48, %47 : vector<6x128xf32>
    %c9 = arith.constant 9 : index
    %50 = memref.load %arg4[%c9] : memref<32xf32, #tpu.memory_space<smem>>
    %c0_21 = arith.constant 0 : index
    %c128_22 = arith.constant 128 : index
    %51 = vector.load %arg1[%c0_21, %c128_22] : memref<6x512xf32, #tpu.memory_space<vmem>>, vector<6x128xf32>
    %52 = vector.broadcast %50 : f32 to vector<6x128xf32>
    %53 = arith.mulf %52, %51 : vector<6x128xf32>
    %54 = arith.addf %49, %53 : vector<6x128xf32>
    %c10 = arith.constant 10 : index
    %55 = memref.load %arg4[%c10] : memref<32xf32, #tpu.memory_space<smem>>
    %c0_23 = arith.constant 0 : index
    %c256_24 = arith.constant 256 : index
    %56 = vector.load %arg1[%c0_23, %c256_24] : memref<6x512xf32, #tpu.memory_space<vmem>>, vector<6x128xf32>
    %57 = vector.broadcast %55 : f32 to vector<6x128xf32>
    %58 = arith.mulf %57, %56 : vector<6x128xf32>
    %59 = arith.addf %54, %58 : vector<6x128xf32>
    %c11 = arith.constant 11 : index
    %60 = memref.load %arg4[%c11] : memref<32xf32, #tpu.memory_space<smem>>
    %c0_25 = arith.constant 0 : index
    %c384_26 = arith.constant 384 : index
    %61 = vector.load %arg1[%c0_25, %c384_26] : memref<6x512xf32, #tpu.memory_space<vmem>>, vector<6x128xf32>
    %62 = vector.broadcast %60 : f32 to vector<6x128xf32>
    %63 = arith.mulf %62, %61 : vector<6x128xf32>
    %64 = arith.addf %59, %63 : vector<6x128xf32>
    %c2_27 = arith.constant 2 : index
    %65 = memref.load %arg7[%c2_27] : memref<8xf32, #tpu.memory_space<smem>>
    %66 = vector.broadcast %65 : f32 to vector<6x128xf32>
    %67 = arith.addf %64, %66 : vector<6x128xf32>
    %c0_28 = arith.constant 0 : index
    %c256_29 = arith.constant 256 : index
    %68 = vector.load %arg10[%c0_28, %c256_29] : memref<6x1024xf32, #tpu.memory_space<vmem>>, vector<6x128xf32>
    tpu.vector_store %arg10[%c0_28, %c256_29], %67 {strides = array<i32>} : memref<6x1024xf32, #tpu.memory_space<vmem>>, vector<6x128xf32>,
    %c12 = arith.constant 12 : index
    %69 = memref.load %arg4[%c12] : memref<32xf32, #tpu.memory_space<smem>>
    %c0_30 = arith.constant 0 : index
    %c0_31 = arith.constant 0 : index
    %70 = vector.load %arg1[%c0_30, %c0_31] : memref<6x512xf32, #tpu.memory_space<vmem>>, vector<6x128xf32>
    %71 = vector.broadcast %69 : f32 to vector<6x128xf32>
    %72 = arith.mulf %71, %70 : vector<6x128xf32>
    %c13 = arith.constant 13 : index
    %73 = memref.load %arg4[%c13] : memref<32xf32, #tpu.memory_space<smem>>
    %c0_32 = arith.constant 0 : index
    %c128_33 = arith.constant 128 : index
    %74 = vector.load %arg1[%c0_32, %c128_33] : memref<6x512xf32, #tpu.memory_space<vmem>>, vector<6x128xf32>
    %75 = vector.broadcast %73 : f32 to vector<6x128xf32>
    %76 = arith.mulf %75, %74 : vector<6x128xf32>
    %77 = arith.addf %72, %76 : vector<6x128xf32>
    %c14 = arith.constant 14 : index
    %78 = memref.load %arg4[%c14] : memref<32xf32, #tpu.memory_space<smem>>
    %c0_34 = arith.constant 0 : index
    %c256_35 = arith.constant 256 : index
    %79 = vector.load %arg1[%c0_34, %c256_35] : memref<6x512xf32, #tpu.memory_space<vmem>>, vector<6x128xf32>
    %80 = vector.broadcast %78 : f32 to vector<6x128xf32>
    %81 = arith.mulf %80, %79 : vector<6x128xf32>
    %82 = arith.addf %77, %81 : vector<6x128xf32>
    %c15 = arith.constant 15 : index
    %83 = memref.load %arg4[%c15] : memref<32xf32, #tpu.memory_space<smem>>
    %c0_36 = arith.constant 0 : index
    %c384_37 = arith.constant 384 : index
    %84 = vector.load %arg1[%c0_36, %c384_37] : memref<6x512xf32, #tpu.memory_space<vmem>>, vector<6x128xf32>
    %85 = vector.broadcast %83 : f32 to vector<6x128xf32>
    %86 = arith.mulf %85, %84 : vector<6x128xf32>
    %87 = arith.addf %82, %86 : vector<6x128xf32>
    %c3_38 = arith.constant 3 : index
    %88 = memref.load %arg7[%c3_38] : memref<8xf32, #tpu.memory_space<smem>>
    %89 = vector.broadcast %88 : f32 to vector<6x128xf32>
    %90 = arith.addf %87, %89 : vector<6x128xf32>
    %c0_39 = arith.constant 0 : index
    %c384_40 = arith.constant 384 : index
    %91 = vector.load %arg10[%c0_39, %c384_40] : memref<6x1024xf32, #tpu.memory_space<vmem>>, vector<6x128xf32>
    tpu.vector_store %arg10[%c0_39, %c384_40], %90 {strides = array<i32>} : memref<6x1024xf32, #tpu.memory_space<vmem>>, vector<6x128xf32>,
    %c16 = arith.constant 16 : index
    %92 = memref.load %arg4[%c16] : memref<32xf32, #tpu.memory_space<smem>>
    %c0_41 = arith.constant 0 : index
    %c0_42 = arith.constant 0 : index
    %93 = vector.load %arg1[%c0_41, %c0_42] : memref<6x512xf32, #tpu.memory_space<vmem>>, vector<6x128xf32>
    %94 = vector.broadcast %92 : f32 to vector<6x128xf32>
    %95 = arith.mulf %94, %93 : vector<6x128xf32>
    %c17 = arith.constant 17 : index
    %96 = memref.load %arg4[%c17] : memref<32xf32, #tpu.memory_space<smem>>
    %c0_43 = arith.constant 0 : index
    %c128_44 = arith.constant 128 : index
    %97 = vector.load %arg1[%c0_43, %c128_44] : memref<6x512xf32, #tpu.memory_space<vmem>>, vector<6x128xf32>
    %98 = vector.broadcast %96 : f32 to vector<6x128xf32>
    %99 = arith.mulf %98, %97 : vector<6x128xf32>
    %100 = arith.addf %95, %99 : vector<6x128xf32>
    %c18 = arith.constant 18 : index
    %101 = memref.load %arg4[%c18] : memref<32xf32, #tpu.memory_space<smem>>
    %c0_45 = arith.constant 0 : index
    %c256_46 = arith.constant 256 : index
    %102 = vector.load %arg1[%c0_45, %c256_46] : memref<6x512xf32, #tpu.memory_space<vmem>>, vector<6x128xf32>
    %103 = vector.broadcast %101 : f32 to vector<6x128xf32>
    %104 = arith.mulf %103, %102 : vector<6x128xf32>
    %105 = arith.addf %100, %104 : vector<6x128xf32>
    %c19 = arith.constant 19 : index
    %106 = memref.load %arg4[%c19] : memref<32xf32, #tpu.memory_space<smem>>
    %c0_47 = arith.constant 0 : index
    %c384_48 = arith.constant 384 : index
    %107 = vector.load %arg1[%c0_47, %c384_48] : memref<6x512xf32, #tpu.memory_space<vmem>>, vector<6x128xf32>
    %108 = vector.broadcast %106 : f32 to vector<6x128xf32>
    %109 = arith.mulf %108, %107 : vector<6x128xf32>
    %110 = arith.addf %105, %109 : vector<6x128xf32>
    %c4_49 = arith.constant 4 : index
    %111 = memref.load %arg7[%c4_49] : memref<8xf32, #tpu.memory_space<smem>>
    %112 = vector.broadcast %111 : f32 to vector<6x128xf32>
    %113 = arith.addf %110, %112 : vector<6x128xf32>
    %c0_50 = arith.constant 0 : index
    %c512 = arith.constant 512 : index
    %114 = vector.load %arg10[%c0_50, %c512] : memref<6x1024xf32, #tpu.memory_space<vmem>>, vector<6x128xf32>
    tpu.vector_store %arg10[%c0_50, %c512], %113 {strides = array<i32>} : memref<6x1024xf32, #tpu.memory_space<vmem>>, vector<6x128xf32>,
    %c20 = arith.constant 20 : index
    %115 = memref.load %arg4[%c20] : memref<32xf32, #tpu.memory_space<smem>>
    %c0_51 = arith.constant 0 : index
    %c0_52 = arith.constant 0 : index
    %116 = vector.load %arg1[%c0_51, %c0_52] : memref<6x512xf32, #tpu.memory_space<vmem>>, vector<6x128xf32>
    %117 = vector.broadcast %115 : f32 to vector<6x128xf32>
    %118 = arith.mulf %117, %116 : vector<6x128xf32>
    %c21 = arith.constant 21 : index
    %119 = memref.load %arg4[%c21] : memref<32xf32, #tpu.memory_space<smem>>
    %c0_53 = arith.constant 0 : index
    %c128_54 = arith.constant 128 : index
    %120 = vector.load %arg1[%c0_53, %c128_54] : memref<6x512xf32, #tpu.memory_space<vmem>>, vector<6x128xf32>
    %121 = vector.broadcast %119 : f32 to vector<6x128xf32>
    %122 = arith.mulf %121, %120 : vector<6x128xf32>
    %123 = arith.addf %118, %122 : vector<6x128xf32>
    %c22 = arith.constant 22 : index
    %124 = memref.load %arg4[%c22] : memref<32xf32, #tpu.memory_space<smem>>
    %c0_55 = arith.constant 0 : index
    %c256_56 = arith.constant 256 : index
    %125 = vector.load %arg1[%c0_55, %c256_56] : memref<6x512xf32, #tpu.memory_space<vmem>>, vector<6x128xf32>
    %126 = vector.broadcast %124 : f32 to vector<6x128xf32>
    %127 = arith.mulf %126, %125 : vector<6x128xf32>
    %128 = arith.addf %123, %127 : vector<6x128xf32>
    %c23 = arith.constant 23 : index
    %129 = memref.load %arg4[%c23] : memref<32xf32, #tpu.memory_space<smem>>
    %c0_57 = arith.constant 0 : index
    %c384_58 = arith.constant 384 : index
    %130 = vector.load %arg1[%c0_57, %c384_58] : memref<6x512xf32, #tpu.memory_space<vmem>>, vector<6x128xf32>
    %131 = vector.broadcast %129 : f32 to vector<6x128xf32>
    %132 = arith.mulf %131, %130 : vector<6x128xf32>
    %133 = arith.addf %128, %132 : vector<6x128xf32>
    %c5_59 = arith.constant 5 : index
    %134 = memref.load %arg7[%c5_59] : memref<8xf32, #tpu.memory_space<smem>>
    %135 = vector.broadcast %134 : f32 to vector<6x128xf32>
    %136 = arith.addf %133, %135 : vector<6x128xf32>
    %c0_60 = arith.constant 0 : index
    %c640 = arith.constant 640 : index
    %137 = vector.load %arg10[%c0_60, %c640] : memref<6x1024xf32, #tpu.memory_space<vmem>>, vector<6x128xf32>
    tpu.vector_store %arg10[%c0_60, %c640], %136 {strides = array<i32>} : memref<6x1024xf32, #tpu.memory_space<vmem>>, vector<6x128xf32>,
    %c24 = arith.constant 24 : index
    %138 = memref.load %arg4[%c24] : memref<32xf32, #tpu.memory_space<smem>>
    %c0_61 = arith.constant 0 : index
    %c0_62 = arith.constant 0 : index
    %139 = vector.load %arg1[%c0_61, %c0_62] : memref<6x512xf32, #tpu.memory_space<vmem>>, vector<6x128xf32>
    %140 = vector.broadcast %138 : f32 to vector<6x128xf32>
    %141 = arith.mulf %140, %139 : vector<6x128xf32>
    %c25 = arith.constant 25 : index
    %142 = memref.load %arg4[%c25] : memref<32xf32, #tpu.memory_space<smem>>
    %c0_63 = arith.constant 0 : index
    %c128_64 = arith.constant 128 : index
    %143 = vector.load %arg1[%c0_63, %c128_64] : memref<6x512xf32, #tpu.memory_space<vmem>>, vector<6x128xf32>
    %144 = vector.broadcast %142 : f32 to vector<6x128xf32>
    %145 = arith.mulf %144, %143 : vector<6x128xf32>
    %146 = arith.addf %141, %145 : vector<6x128xf32>
    %c26 = arith.constant 26 : index
    %147 = memref.load %arg4[%c26] : memref<32xf32, #tpu.memory_space<smem>>
    %c0_65 = arith.constant 0 : index
    %c256_66 = arith.constant 256 : index
    %148 = vector.load %arg1[%c0_65, %c256_66] : memref<6x512xf32, #tpu.memory_space<vmem>>, vector<6x128xf32>
    %149 = vector.broadcast %147 : f32 to vector<6x128xf32>
    %150 = arith.mulf %149, %148 : vector<6x128xf32>
    %151 = arith.addf %146, %150 : vector<6x128xf32>
    %c27 = arith.constant 27 : index
    %152 = memref.load %arg4[%c27] : memref<32xf32, #tpu.memory_space<smem>>
    %c0_67 = arith.constant 0 : index
    %c384_68 = arith.constant 384 : index
    %153 = vector.load %arg1[%c0_67, %c384_68] : memref<6x512xf32, #tpu.memory_space<vmem>>, vector<6x128xf32>
    %154 = vector.broadcast %152 : f32 to vector<6x128xf32>
    %155 = arith.mulf %154, %153 : vector<6x128xf32>
    %156 = arith.addf %151, %155 : vector<6x128xf32>
    %c6_69 = arith.constant 6 : index
    %157 = memref.load %arg7[%c6_69] : memref<8xf32, #tpu.memory_space<smem>>
    %158 = vector.broadcast %157 : f32 to vector<6x128xf32>
    %159 = arith.addf %156, %158 : vector<6x128xf32>
    %c0_70 = arith.constant 0 : index
    %c768 = arith.constant 768 : index
    %160 = vector.load %arg10[%c0_70, %c768] : memref<6x1024xf32, #tpu.memory_space<vmem>>, vector<6x128xf32>
    tpu.vector_store %arg10[%c0_70, %c768], %159 {strides = array<i32>} : memref<6x1024xf32, #tpu.memory_space<vmem>>, vector<6x128xf32>,
    %c28 = arith.constant 28 : index
    %161 = memref.load %arg4[%c28] : memref<32xf32, #tpu.memory_space<smem>>
    %c0_71 = arith.constant 0 : index
    %c0_72 = arith.constant 0 : index
    %162 = vector.load %arg1[%c0_71, %c0_72] : memref<6x512xf32, #tpu.memory_space<vmem>>, vector<6x128xf32>
    %163 = vector.broadcast %161 : f32 to vector<6x128xf32>
    %164 = arith.mulf %163, %162 : vector<6x128xf32>
    %c29 = arith.constant 29 : index
    %165 = memref.load %arg4[%c29] : memref<32xf32, #tpu.memory_space<smem>>
    %c0_73 = arith.constant 0 : index
    %c128_74 = arith.constant 128 : index
    %166 = vector.load %arg1[%c0_73, %c128_74] : memref<6x512xf32, #tpu.memory_space<vmem>>, vector<6x128xf32>
    %167 = vector.broadcast %165 : f32 to vector<6x128xf32>
    %168 = arith.mulf %167, %166 : vector<6x128xf32>
    %169 = arith.addf %164, %168 : vector<6x128xf32>
    %c30 = arith.constant 30 : index
    %170 = memref.load %arg4[%c30] : memref<32xf32, #tpu.memory_space<smem>>
    %c0_75 = arith.constant 0 : index
    %c256_76 = arith.constant 256 : index
    %171 = vector.load %arg1[%c0_75, %c256_76] : memref<6x512xf32, #tpu.memory_space<vmem>>, vector<6x128xf32>
    %172 = vector.broadcast %170 : f32 to vector<6x128xf32>
    %173 = arith.mulf %172, %171 : vector<6x128xf32>
    %174 = arith.addf %169, %173 : vector<6x128xf32>
    %c31 = arith.constant 31 : index
    %175 = memref.load %arg4[%c31] : memref<32xf32, #tpu.memory_space<smem>>
    %c0_77 = arith.constant 0 : index
    %c384_78 = arith.constant 384 : index
    %176 = vector.load %arg1[%c0_77, %c384_78] : memref<6x512xf32, #tpu.memory_space<vmem>>, vector<6x128xf32>
    %177 = vector.broadcast %175 : f32 to vector<6x128xf32>
    %178 = arith.mulf %177, %176 : vector<6x128xf32>
    %179 = arith.addf %174, %178 : vector<6x128xf32>
    %c7_79 = arith.constant 7 : index
    %180 = memref.load %arg7[%c7_79] : memref<8xf32, #tpu.memory_space<smem>>
    %181 = vector.broadcast %180 : f32 to vector<6x128xf32>
    %182 = arith.addf %179, %181 : vector<6x128xf32>
    %c0_80 = arith.constant 0 : index
    %c896 = arith.constant 896 : index
    %183 = vector.load %arg10[%c0_80, %c896] : memref<6x1024xf32, #tpu.memory_space<vmem>>, vector<6x128xf32>
    tpu.vector_store %arg10[%c0_80, %c896], %182 {strides = array<i32>} : memref<6x1024xf32, #tpu.memory_space<vmem>>, vector<6x128xf32>,
    %c0_81 = arith.constant 0 : index
    %184 = memref.load %arg5[%c0_81] : memref<18xf32, #tpu.memory_space<smem>>
    %c0_82 = arith.constant 0 : index
    %c0_83 = arith.constant 0 : index
    %185 = vector.load %arg2[%c0_82, %c0_83] : memref<6x384xf32, #tpu.memory_space<vmem>>, vector<6x128xf32>
    %186 = vector.broadcast %184 : f32 to vector<6x128xf32>
    %187 = arith.mulf %186, %185 : vector<6x128xf32>
    %c1_84 = arith.constant 1 : index
    %188 = memref.load %arg5[%c1_84] : memref<18xf32, #tpu.memory_space<smem>>
    %c0_85 = arith.constant 0 : index
    %c128_86 = arith.constant 128 : index
    %189 = vector.load %arg2[%c0_85, %c128_86] : memref<6x384xf32, #tpu.memory_space<vmem>>, vector<6x128xf32>
    %190 = vector.broadcast %188 : f32 to vector<6x128xf32>
    %191 = arith.mulf %190, %189 : vector<6x128xf32>
    %192 = arith.addf %187, %191 : vector<6x128xf32>
    %c2_87 = arith.constant 2 : index
    %193 = memref.load %arg5[%c2_87] : memref<18xf32, #tpu.memory_space<smem>>
    %c0_88 = arith.constant 0 : index
    %c256_89 = arith.constant 256 : index
    %194 = vector.load %arg2[%c0_88, %c256_89] : memref<6x384xf32, #tpu.memory_space<vmem>>, vector<6x128xf32>
    %195 = vector.broadcast %193 : f32 to vector<6x128xf32>
    %196 = arith.mulf %195, %194 : vector<6x128xf32>
    %197 = arith.addf %192, %196 : vector<6x128xf32>
    %c0_90 = arith.constant 0 : index
    %198 = memref.load %arg8[%c0_90] : memref<6xf32, #tpu.memory_space<smem>>
    %199 = vector.broadcast %198 : f32 to vector<6x128xf32>
    %200 = arith.addf %197, %199 : vector<6x128xf32>
    %c0_91 = arith.constant 0 : index
    %c0_92 = arith.constant 0 : index
    %201 = vector.load %arg11[%c0_91, %c0_92] : memref<6x768xf32, #tpu.memory_space<vmem>>, vector<6x128xf32>
    tpu.vector_store %arg11[%c0_91, %c0_92], %200 {strides = array<i32>} : memref<6x768xf32, #tpu.memory_space<vmem>>, vector<6x128xf32>,
    %c3_93 = arith.constant 3 : index
    %202 = memref.load %arg5[%c3_93] : memref<18xf32, #tpu.memory_space<smem>>
    %c0_94 = arith.constant 0 : index
    %c0_95 = arith.constant 0 : index
    %203 = vector.load %arg2[%c0_94, %c0_95] : memref<6x384xf32, #tpu.memory_space<vmem>>, vector<6x128xf32>
    %204 = vector.broadcast %202 : f32 to vector<6x128xf32>
    %205 = arith.mulf %204, %203 : vector<6x128xf32>
    %c4_96 = arith.constant 4 : index
    %206 = memref.load %arg5[%c4_96] : memref<18xf32, #tpu.memory_space<smem>>
    %c0_97 = arith.constant 0 : index
    %c128_98 = arith.constant 128 : index
    %207 = vector.load %arg2[%c0_97, %c128_98] : memref<6x384xf32, #tpu.memory_space<vmem>>, vector<6x128xf32>
    %208 = vector.broadcast %206 : f32 to vector<6x128xf32>
    %209 = arith.mulf %208, %207 : vector<6x128xf32>
    %210 = arith.addf %205, %209 : vector<6x128xf32>
    %c5_99 = arith.constant 5 : index
    %211 = memref.load %arg5[%c5_99] : memref<18xf32, #tpu.memory_space<smem>>
    %c0_100 = arith.constant 0 : index
    %c256_101 = arith.constant 256 : index
    %212 = vector.load %arg2[%c0_100, %c256_101] : memref<6x384xf32, #tpu.memory_space<vmem>>, vector<6x128xf32>
    %213 = vector.broadcast %211 : f32 to vector<6x128xf32>
    %214 = arith.mulf %213, %212 : vector<6x128xf32>
    %215 = arith.addf %210, %214 : vector<6x128xf32>
    %c1_102 = arith.constant 1 : index
    %216 = memref.load %arg8[%c1_102] : memref<6xf32, #tpu.memory_space<smem>>
    %217 = vector.broadcast %216 : f32 to vector<6x128xf32>
    %218 = arith.addf %215, %217 : vector<6x128xf32>
    %c0_103 = arith.constant 0 : index
    %c128_104 = arith.constant 128 : index
    %219 = vector.load %arg11[%c0_103, %c128_104] : memref<6x768xf32, #tpu.memory_space<vmem>>, vector<6x128xf32>
    tpu.vector_store %arg11[%c0_103, %c128_104], %218 {strides = array<i32>} : memref<6x768xf32, #tpu.memory_space<vmem>>, vector<6x128xf32>,
    %c6_105 = arith.constant 6 : index
    %220 = memref.load %arg5[%c6_105] : memref<18xf32, #tpu.memory_space<smem>>
    %c0_106 = arith.constant 0 : index
    %c0_107 = arith.constant 0 : index
    %221 = vector.load %arg2[%c0_106, %c0_107] : memref<6x384xf32, #tpu.memory_space<vmem>>, vector<6x128xf32>
    %222 = vector.broadcast %220 : f32 to vector<6x128xf32>
    %223 = arith.mulf %222, %221 : vector<6x128xf32>
    %c7_108 = arith.constant 7 : index
    %224 = memref.load %arg5[%c7_108] : memref<18xf32, #tpu.memory_space<smem>>
    %c0_109 = arith.constant 0 : index
    %c128_110 = arith.constant 128 : index
    %225 = vector.load %arg2[%c0_109, %c128_110] : memref<6x384xf32, #tpu.memory_space<vmem>>, vector<6x128xf32>
    %226 = vector.broadcast %224 : f32 to vector<6x128xf32>
    %227 = arith.mulf %226, %225 : vector<6x128xf32>
    %228 = arith.addf %223, %227 : vector<6x128xf32>
    %c8_111 = arith.constant 8 : index
    %229 = memref.load %arg5[%c8_111] : memref<18xf32, #tpu.memory_space<smem>>
    %c0_112 = arith.constant 0 : index
    %c256_113 = arith.constant 256 : index
    %230 = vector.load %arg2[%c0_112, %c256_113] : memref<6x384xf32, #tpu.memory_space<vmem>>, vector<6x128xf32>
    %231 = vector.broadcast %229 : f32 to vector<6x128xf32>
    %232 = arith.mulf %231, %230 : vector<6x128xf32>
    %233 = arith.addf %228, %232 : vector<6x128xf32>
    %c2_114 = arith.constant 2 : index
    %234 = memref.load %arg8[%c2_114] : memref<6xf32, #tpu.memory_space<smem>>
    %235 = vector.broadcast %234 : f32 to vector<6x128xf32>
    %236 = arith.addf %233, %235 : vector<6x128xf32>
    %c0_115 = arith.constant 0 : index
    %c256_116 = arith.constant 256 : index
    %237 = vector.load %arg11[%c0_115, %c256_116] : memref<6x768xf32, #tpu.memory_space<vmem>>, vector<6x128xf32>
    tpu.vector_store %arg11[%c0_115, %c256_116], %236 {strides = array<i32>} : memref<6x768xf32, #tpu.memory_space<vmem>>, vector<6x128xf32>,
    %c9_117 = arith.constant 9 : index
    %238 = memref.load %arg5[%c9_117] : memref<18xf32, #tpu.memory_space<smem>>
    %c0_118 = arith.constant 0 : index
    %c0_119 = arith.constant 0 : index
    %239 = vector.load %arg2[%c0_118, %c0_119] : memref<6x384xf32, #tpu.memory_space<vmem>>, vector<6x128xf32>
    %240 = vector.broadcast %238 : f32 to vector<6x128xf32>
    %241 = arith.mulf %240, %239 : vector<6x128xf32>
    %c10_120 = arith.constant 10 : index
    %242 = memref.load %arg5[%c10_120] : memref<18xf32, #tpu.memory_space<smem>>
    %c0_121 = arith.constant 0 : index
    %c128_122 = arith.constant 128 : index
    %243 = vector.load %arg2[%c0_121, %c128_122] : memref<6x384xf32, #tpu.memory_space<vmem>>, vector<6x128xf32>
    %244 = vector.broadcast %242 : f32 to vector<6x128xf32>
    %245 = arith.mulf %244, %243 : vector<6x128xf32>
    %246 = arith.addf %241, %245 : vector<6x128xf32>
    %c11_123 = arith.constant 11 : index
    %247 = memref.load %arg5[%c11_123] : memref<18xf32, #tpu.memory_space<smem>>
    %c0_124 = arith.constant 0 : index
    %c256_125 = arith.constant 256 : index
    %248 = vector.load %arg2[%c0_124, %c256_125] : memref<6x384xf32, #tpu.memory_space<vmem>>, vector<6x128xf32>
    %249 = vector.broadcast %247 : f32 to vector<6x128xf32>
    %250 = arith.mulf %249, %248 : vector<6x128xf32>
    %251 = arith.addf %246, %250 : vector<6x128xf32>
    %c3_126 = arith.constant 3 : index
    %252 = memref.load %arg8[%c3_126] : memref<6xf32, #tpu.memory_space<smem>>
    %253 = vector.broadcast %252 : f32 to vector<6x128xf32>
    %254 = arith.addf %251, %253 : vector<6x128xf32>
    %c0_127 = arith.constant 0 : index
    %c384_128 = arith.constant 384 : index
    %255 = vector.load %arg11[%c0_127, %c384_128] : memref<6x768xf32, #tpu.memory_space<vmem>>, vector<6x128xf32>
    tpu.vector_store %arg11[%c0_127, %c384_128], %254 {strides = array<i32>} : memref<6x768xf32, #tpu.memory_space<vmem>>, vector<6x128xf32>,
    %c12_129 = arith.constant 12 : index
    %256 = memref.load %arg5[%c12_129] : memref<18xf32, #tpu.memory_space<smem>>
    %c0_130 = arith.constant 0 : index
    %c0_131 = arith.constant 0 : index
    %257 = vector.load %arg2[%c0_130, %c0_131] : memref<6x384xf32, #tpu.memory_space<vmem>>, vector<6x128xf32>
    %258 = vector.broadcast %256 : f32 to vector<6x128xf32>
    %259 = arith.mulf %258, %257 : vector<6x128xf32>
    %c13_132 = arith.constant 13 : index
    %260 = memref.load %arg5[%c13_132] : memref<18xf32, #tpu.memory_space<smem>>
    %c0_133 = arith.constant 0 : index
    %c128_134 = arith.constant 128 : index
    %261 = vector.load %arg2[%c0_133, %c128_134] : memref<6x384xf32, #tpu.memory_space<vmem>>, vector<6x128xf32>
    %262 = vector.broadcast %260 : f32 to vector<6x128xf32>
    %263 = arith.mulf %262, %261 : vector<6x128xf32>
    %264 = arith.addf %259, %263 : vector<6x128xf32>
    %c14_135 = arith.constant 14 : index
    %265 = memref.load %arg5[%c14_135] : memref<18xf32, #tpu.memory_space<smem>>
    %c0_136 = arith.constant 0 : index
    %c256_137 = arith.constant 256 : index
    %266 = vector.load %arg2[%c0_136, %c256_137] : memref<6x384xf32, #tpu.memory_space<vmem>>, vector<6x128xf32>
    %267 = vector.broadcast %265 : f32 to vector<6x128xf32>
    %268 = arith.mulf %267, %266 : vector<6x128xf32>
    %269 = arith.addf %264, %268 : vector<6x128xf32>
    %c4_138 = arith.constant 4 : index
    %270 = memref.load %arg8[%c4_138] : memref<6xf32, #tpu.memory_space<smem>>
    %271 = vector.broadcast %270 : f32 to vector<6x128xf32>
    %272 = arith.addf %269, %271 : vector<6x128xf32>
    %c0_139 = arith.constant 0 : index
    %c512_140 = arith.constant 512 : index
    %273 = vector.load %arg11[%c0_139, %c512_140] : memref<6x768xf32, #tpu.memory_space<vmem>>, vector<6x128xf32>
    tpu.vector_store %arg11[%c0_139, %c512_140], %272 {strides = array<i32>} : memref<6x768xf32, #tpu.memory_space<vmem>>, vector<6x128xf32>,
    %c15_141 = arith.constant 15 : index
    %274 = memref.load %arg5[%c15_141] : memref<18xf32, #tpu.memory_space<smem>>
    %c0_142 = arith.constant 0 : index
    %c0_143 = arith.constant 0 : index
    %275 = vector.load %arg2[%c0_142, %c0_143] : memref<6x384xf32, #tpu.memory_space<vmem>>, vector<6x128xf32>
    %276 = vector.broadcast %274 : f32 to vector<6x128xf32>
    %277 = arith.mulf %276, %275 : vector<6x128xf32>
    %c16_144 = arith.constant 16 : index
    %278 = memref.load %arg5[%c16_144] : memref<18xf32, #tpu.memory_space<smem>>
    %c0_145 = arith.constant 0 : index
    %c128_146 = arith.constant 128 : index
    %279 = vector.load %arg2[%c0_145, %c128_146] : memref<6x384xf32, #tpu.memory_space<vmem>>, vector<6x128xf32>
    %280 = vector.broadcast %278 : f32 to vector<6x128xf32>
    %281 = arith.mulf %280, %279 : vector<6x128xf32>
    %282 = arith.addf %277, %281 : vector<6x128xf32>
    %c17_147 = arith.constant 17 : index
    %283 = memref.load %arg5[%c17_147] : memref<18xf32, #tpu.memory_space<smem>>
    %c0_148 = arith.constant 0 : index
    %c256_149 = arith.constant 256 : index
    %284 = vector.load %arg2[%c0_148, %c256_149] : memref<6x384xf32, #tpu.memory_space<vmem>>, vector<6x128xf32>
    %285 = vector.broadcast %283 : f32 to vector<6x128xf32>
    %286 = arith.mulf %285, %284 : vector<6x128xf32>
    %287 = arith.addf %282, %286 : vector<6x128xf32>
    %c5_150 = arith.constant 5 : index
    %288 = memref.load %arg8[%c5_150] : memref<6xf32, #tpu.memory_space<smem>>
    %289 = vector.broadcast %288 : f32 to vector<6x128xf32>
    %290 = arith.addf %287, %289 : vector<6x128xf32>
    %c0_151 = arith.constant 0 : index
    %c640_152 = arith.constant 640 : index
    %291 = vector.load %arg11[%c0_151, %c640_152] : memref<6x768xf32, #tpu.memory_space<vmem>>, vector<6x128xf32>
    tpu.vector_store %arg11[%c0_151, %c640_152], %290 {strides = array<i32>} : memref<6x768xf32, #tpu.memory_space<vmem>>, vector<6x128xf32>,
    %c0_153 = arith.constant 0 : index
    %292 = memref.load %arg6[%c0_153] : memref<1xf32, #tpu.memory_space<smem>>
    %c0_154 = arith.constant 0 : index
    %c0_155 = arith.constant 0 : index
    %293 = vector.load %arg3[%c0_154, %c0_155] : memref<6x128xf32, #tpu.memory_space<vmem>>, vector<6x128xf32>
    %294 = vector.broadcast %292 : f32 to vector<6x128xf32>
    %295 = arith.mulf %294, %293 : vector<6x128xf32>
    %c0_156 = arith.constant 0 : index
    %296 = memref.load %arg9[%c0_156] : memref<1xf32, #tpu.memory_space<smem>>
    %297 = vector.broadcast %296 : f32 to vector<6x128xf32>
    %298 = arith.addf %295, %297 : vector<6x128xf32>
    %c0_157 = arith.constant 0 : index
    %c0_158 = arith.constant 0 : index
    %299 = vector.load %arg12[%c0_157, %c0_158] : memref<6x128xf32, #tpu.memory_space<vmem>>, vector<6x128xf32>
    tpu.vector_store %arg12[%c0_157, %c0_158], %298 {strides = array<i32>} : memref<6x128xf32, #tpu.memory_space<vmem>>, vector<6x128xf32>,
    return
  }
  func.func @transform_0(%arg0: i32) -> (i32, i32) {
    %c0_i32 = arith.constant 0 : i32
    %c0_i32_0 = arith.constant 0 : i32
    return %arg0, %c0_i32 : i32, i32
  }
  func.func @transform_1(%arg0: i32) -> (i32, i32) {
    %c0_i32 = arith.constant 0 : i32
    %c0_i32_0 = arith.constant 0 : i32
    return %arg0, %c0_i32 : i32, i32
  }
  func.func @transform_2(%arg0: i32) -> (i32, i32) {
    %c0_i32 = arith.constant 0 : i32
    %c0_i32_0 = arith.constant 0 : i32
    return %arg0, %c0_i32 : i32, i32
  }
  func.func @transform_3(%arg0: i32) -> i32 {
    %c0_i32 = arith.constant 0 : i32
    %c0_i32_0 = arith.constant 0 : i32
    return %c0_i32 : i32
  }
  func.func @transform_4(%arg0: i32) -> i32 {
    %c0_i32 = arith.constant 0 : i32
    %c0_i32_0 = arith.constant 0 : i32
    return %c0_i32 : i32
  }
  func.func @transform_5(%arg0: i32) -> i32 {
    %c0_i32 = arith.constant 0 : i32
    %c0_i32_0 = arith.constant 0 : i32
    return %c0_i32 : i32
  }
  func.func @transform_6(%arg0: i32) -> i32 {
    %c0_i32 = arith.constant 0 : i32
    %c0_i32_0 = arith.constant 0 : i32
    return %c0_i32 : i32
  }
  func.func @transform_7(%arg0: i32) -> i32 {
    %c0_i32 = arith.constant 0 : i32
    %c0_i32_0 = arith.constant 0 : i32
    return %c0_i32 : i32
  }
  func.func @transform_8(%arg0: i32) -> i32 {
    %c0_i32 = arith.constant 0 : i32
    %c0_i32_0 = arith.constant 0 : i32
    return %c0_i32 : i32
  }
  func.func @transform_9(%arg0: i32) -> (i32, i32) {
    %c0_i32 = arith.constant 0 : i32
    %c0_i32_0 = arith.constant 0 : i32
    return %arg0, %c0_i32 : i32, i32
  }
  func.func @transform_10(%arg0: i32) -> (i32, i32) {
    %c0_i32 = arith.constant 0 : i32
    %c0_i32_0 = arith.constant 0 : i32
    return %arg0, %c0_i32 : i32, i32
  }
  func.func @transform_11(%arg0: i32) -> (i32, i32) {
    %c0_i32 = arith.constant 0 : i32
    %c0_i32_0 = arith.constant 0 : i32
    return %arg0, %c0_i32 : i32, i32
  }
}

</mosaic_0001>

<llo_original>
// kernel: tpu_custom_call.1
$region0: #{tpu_custom_call.1}
  #allocation0 [shape = 'u32[]', space=smem, size = 0x4, offset = 0x4, fixed_abs, tag = 'smem constant byte address 0x4 - core index']
  #allocation1 [shape = 'u32[144,128]{1,0:T(1,128)}', space=vmem, size = 0x12000, scoped, tag = 'internal scratch']
  #allocation2 [shape = 'f32[1]{0:T(128)S(6)}', space=smem, size = 0x200, scoped, tag = 'scoped memory for tpu_custom_call.1']
  #allocation3 [shape = 'f32[1]{0:T(128)S(6)}', space=smem, size = 0x200, scoped, tag = 'scoped memory for tpu_custom_call.1']
  %s0 = inlined_call_operand.hbm [shape: f32[6,512], index: 0, kind: input, shape index: {}]
  %s1 = inlined_call_operand.hbm [shape: f32[6,384], index: 1, kind: input, shape index: {}]
  %s2 = inlined_call_operand.vmem [shape: f32[6,128], index: 2, kind: input, shape index: {}]
  %s3 = inlined_call_operand.vmem [shape: f32[32], index: 3, kind: input, shape index: {}]
  %s4 = inlined_call_operand.vmem [shape: f32[18], index: 4, kind: input, shape index: {}]
  %s5 = inlined_call_operand.<no memory space> [shape: f32[1], index: 5, kind: input, shape index: {}]
  %s6 = inlined_call_operand.vmem [shape: f32[8], index: 6, kind: input, shape index: {}]
  %s7 = inlined_call_operand.vmem [shape: f32[6], index: 7, kind: input, shape index: {}]
  %s8 = inlined_call_operand.<no memory space> [shape: f32[1], index: 8, kind: input, shape index: {}]
  %s9 = inlined_call_operand.hbm [shape: f32[6,1024], index: 9, kind: output, shape index: {0}]
  %s10 = inlined_call_operand.hbm [shape: f32[6,768], index: 10, kind: output, shape index: {1}]
  %s11 = inlined_call_operand.hbm [shape: f32[6,128], index: 11, kind: output, shape index: {2}]
  %12 = xla_tuple %s9, %s10, %s11
  %s13 = sld [smem:[#allocation0]]
  $region86: #{tpu_custom_call.1} parent=0
    _
  %s15 = ssub.s32 1, %s13
  %s16 = scalar_select 0, %s15, %s13
  %17 = sst [smem:[#allocation2]] %s5
  %18 = sst [smem:[#allocation3]] %s8
  $region1: #{tpu_custom_call.1} parent=0
    #allocation4 [shape = 'u8[16384]{0}', space=vmem, size = 0x4000, scoped, tag = 'input window, operand 0, single buffered']
    #allocation5 [shape = 's32[1]{0}', space=sflag, size = 0x4, scoped, tag = 'scoped memory for tpu_custom_call.1']
    #allocation6 [shape = 's32[1]{0}', space=sflag, size = 0x4, scoped, tag = 'scoped memory for tpu_custom_call.1']
    #allocation7 [shape = 's32[1]{0}', space=sflag, size = 0x4, scoped, tag = 'scoped memory for tpu_custom_call.1']
    #allocation8 [shape = 'u8[12288]{0}', space=vmem, size = 0x3000, scoped, tag = 'input window, operand 1, single buffered']
    #allocation9 [shape = 's32[1]{0}', space=sflag, size = 0x4, scoped, tag = 'scoped memory for tpu_custom_call.1']
    #allocation10 [shape = 'u8[512]{0}', space=smem, size = 0x200, scoped, tag = 'input window, operand 3, single buffered']
    #allocation11 [shape = 'u8[512]{0}', space=smem, size = 0x200, scoped, tag = 'input window, operand 4, single buffered']
    #allocation12 [shape = 's32[1]{0}', space=sflag, size = 0x4, scoped, tag = 'scoped memory for tpu_custom_call.1']
    #allocation13 [shape = 'u8[512]{0}', space=smem, size = 0x200, scoped, tag = 'input window, operand 6, single buffered']
    #allocation14 [shape = 'u8[512]{0}', space=smem, size = 0x200, scoped, tag = 'input window, operand 7, single buffered']
    #allocation15 [shape = 's32[1]{0}', space=sflag, size = 0x4, scoped, tag = 'scoped memory for tpu_custom_call.1']
    #allocation16 [shape = 'u8[32768]{0}', space=vmem, size = 0x8000, scoped, tag = 'output window, operand 0, single buffered']
    #allocation17 [shape = 'u8[24576]{0}', space=vmem, size = 0x6000, scoped, tag = 'output window, operand 1, single buffered']
    #allocation18 [shape = 's32[1]{0}', space=sflag, size = 0x4, scoped, tag = 'scoped memory for tpu_custom_call.1']
    #allocation19 [shape = 'u8[4096]{0}', space=vmem, size = 0x1000, scoped, tag = 'output window, operand 2, single buffered']
    %19 = vsyncpa [#allocation5], 0
    %20 = vsyncpa [#allocation9], 0
    %21 = vsyncpa [#allocation7], 0
    %22 = vsyncpa [#allocation12], 0
    %23 = vsyncpa [#allocation15], 0
    %24 = vsyncpa [#allocation6], 0
    %25 = vsyncpa [#allocation18], 0
    // Predicated region
    $region2: #{tpu_custom_call.1} parent=1 // pred_check
      _
    $region3: #{tpu_custom_call.1} parent=1 // pred_check_branch
      %27 = sbr.rel (0) target = $region5
    $region4: #{tpu_custom_call.1} parent=1 // pred_region
      %s29 = ssub.s32 512, 512
      %30 = vsyncadd [#allocation5], %s29
      %s32 = sshll.u32 [#allocation4], 4
      %s33 = int_to_ptr.vmem [resolvable:$true] %s32
      %35 = dma.hbm_to_vmem [thread:$0]  %s0, 512, %s33, [#allocation5]
    $region5: #{tpu_custom_call.1} parent=1 // pred_fallthru
      _
    // Predicated region
    $region6: #{tpu_custom_call.1} parent=1 // pred_check
      _
    $region7: #{tpu_custom_call.1} parent=1 // pred_check_branch
      %37 = sbr.rel (0) target = $region9
    $region8: #{tpu_custom_call.1} parent=1 // pred_region
      %s39 = ssub.s32 384, 384
      %40 = vsyncadd [#allocation9], %s39
      %s42 = sshll.u32 [#allocation8], 4
      %s43 = int_to_ptr.vmem [resolvable:$true] %s42
      %45 = dma.hbm_to_vmem [thread:$0]  %s1, 384, %s43, [#allocation9]
    $region9: #{tpu_custom_call.1} parent=1 // pred_fallthru
      _
    // Predicated region
    $region10: #{tpu_custom_call.1} parent=1 // pred_check
      _
    $region11: #{tpu_custom_call.1} parent=1 // pred_check_branch
      %47 = sbr.rel (0) target = $region13
    $region12: #{tpu_custom_call.1} parent=1 // pred_region
      _
    $region13: #{tpu_custom_call.1} parent=1 // pred_fallthru
      _
    // Predicated region
    $region14: #{tpu_custom_call.1} parent=1 // pred_check
      _
    $region15: #{tpu_custom_call.1} parent=1 // pred_check_branch
      %49 = sbr.rel (0) target = $region17
    $region16: #{tpu_custom_call.1} parent=1 // pred_region
      %s51 = ssub.s32 16, 16
      %52 = vsyncadd [#allocation7], %s51
      %s54 = sshll.u32 %s3, 4
      %s55 = int_to_ptr.vmem [resolvable:$true] %s54
      %57 = dma.vmem_to_smem %s55, 16, [#allocation10], [#allocation7]
    $region17: #{tpu_custom_call.1} parent=1 // pred_fallthru
      _
    // Predicated region
    $region18: #{tpu_custom_call.1} parent=1 // pred_check
      _
    $region19: #{tpu_custom_call.1} parent=1 // pred_check_branch
      %59 = sbr.rel (0) target = $region21
    $region20: #{tpu_custom_call.1} parent=1 // pred_region
      %s61 = ssub.s32 16, 16
      %62 = vsyncadd [#allocation12], %s61
      %s64 = sshll.u32 %s4, 4
      %s65 = int_to_ptr.vmem [resolvable:$true] %s64
      %67 = dma.vmem_to_smem %s65, 16, [#allocation11], [#allocation12]
    $region21: #{tpu_custom_call.1} parent=1 // pred_fallthru
      _
    // Predicated region
    $region22: #{tpu_custom_call.1} parent=1 // pred_check
      _
    $region23: #{tpu_custom_call.1} parent=1 // pred_check_branch
      %69 = sbr.rel (0) target = $region25
    $region24: #{tpu_custom_call.1} parent=1 // pred_region
      _
    $region25: #{tpu_custom_call.1} parent=1 // pred_fallthru
      _
    // Predicated region
    $region26: #{tpu_custom_call.1} parent=1 // pred_check
      _
    $region27: #{tpu_custom_call.1} parent=1 // pred_check_branch
      %71 = sbr.rel (0) target = $region29
    $region28: #{tpu_custom_call.1} parent=1 // pred_region
      %s73 = ssub.s32 16, 16
      %74 = vsyncadd [#allocation12], %s73
      %s76 = sshll.u32 %s6, 4
      %s77 = int_to_ptr.vmem [resolvable:$true] %s76
      %79 = dma.vmem_to_smem %s77, 16, [#allocation13], [#allocation12]
    $region29: #{tpu_custom_call.1} parent=1 // pred_fallthru
      _
    // Predicated region
    $region30: #{tpu_custom_call.1} parent=1 // pred_check
      _
    $region31: #{tpu_custom_call.1} parent=1 // pred_check_branch
      %81 = sbr.rel (0) target = $region33
    $region32: #{tpu_custom_call.1} parent=1 // pred_region
      %s83 = ssub.s32 16, 16
      %84 = vsyncadd [#allocation15], %s83
      %s86 = sshll.u32 %s7, 4
      %s87 = int_to_ptr.vmem [resolvable:$true] %s86
      %89 = dma.vmem_to_smem %s87, 16, [#allocation14], [#allocation15]
    $region33: #{tpu_custom_call.1} parent=1 // pred_fallthru
      _
    // Predicated region
    $region34: #{tpu_custom_call.1} parent=1 // pred_check
      _
    $region35: #{tpu_custom_call.1} parent=1 // pred_check_branch
      %91 = sbr.rel (0) target = $region37
    $region36: #{tpu_custom_call.1} parent=1 // pred_region
      _
    $region37: #{tpu_custom_call.1} parent=1 // pred_fallthru
      _
    // Predicated region
    $region38: #{tpu_custom_call.1} parent=1 // pred_check
      _
    $region39: #{tpu_custom_call.1} parent=1 // pred_check_branch
      %93 = sbr.rel (0) target = $region41
    $region40: #{tpu_custom_call.1} parent=1 // pred_region
      %94 = dma.done [#allocation5], 512
    $region41: #{tpu_custom_call.1} parent=1 // pred_fallthru
      _
    // Predicated region
    $region42: #{tpu_custom_call.1} parent=1 // pred_check
      _
    $region43: #{tpu_custom_call.1} parent=1 // pred_check_branch
      %96 = sbr.rel (0) target = $region45
    $region44: #{tpu_custom_call.1} parent=1 // pred_region
      %97 = dma.done [#allocation9], 384
    $region45: #{tpu_custom_call.1} parent=1 // pred_fallthru
      _
    // Predicated region
    $region46: #{tpu_custom_call.1} parent=1 // pred_check
      _
    $region47: #{tpu_custom_call.1} parent=1 // pred_check_branch
      %99 = sbr.rel (0) target = $region49
    $region48: #{tpu_custom_call.1} parent=1 // pred_region
      %100 = dma.done [#allocation7], 16
    $region49: #{tpu_custom_call.1} parent=1 // pred_fallthru
      _
    // Predicated region
    $region50: #{tpu_custom_call.1} parent=1 // pred_check
      _
    $region51: #{tpu_custom_call.1} parent=1 // pred_check_branch
      %102 = sbr.rel (0) target = $region53
    $region52: #{tpu_custom_call.1} parent=1 // pred_region
      %103 = dma.done [#allocation12], 16
    $region53: #{tpu_custom_call.1} parent=1 // pred_fallthru
      _
    // Predicated region
    $region54: #{tpu_custom_call.1} parent=1 // pred_check
      _
    $region55: #{tpu_custom_call.1} parent=1 // pred_check_branch
      %105 = sbr.rel (0) target = $region57
    $region56: #{tpu_custom_call.1} parent=1 // pred_region
      %106 = dma.done [#allocation12], 16
    $region57: #{tpu_custom_call.1} parent=1 // pred_fallthru
      _
    // Predicated region
    $region58: #{tpu_custom_call.1} parent=1 // pred_check
      _
    $region59: #{tpu_custom_call.1} parent=1 // pred_check_branch
      %108 = sbr.rel (0) target = $region61
    $region60: #{tpu_custom_call.1} parent=1 // pred_region
      %109 = dma.done [#allocation15], 16
    $region61: #{tpu_custom_call.1} parent=1 // pred_fallthru
      _
    %110 = sfence
    %s111 = sld [smem:[#allocation10]]
    %v112 = vld [vmem:[#allocation4] sm:$0x3f]
    %v113 = vstv %s111
    %v114 = vmul.f32 %v113, %v112
    %s115 = sld [smem:[#allocation10 + $0x1]]
    %v116 = vld [vmem:[#allocation4 + $0x8] sm:$0x3f]
    %v117 = vstv %s115
    %v118 = vmul.f32 %v117, %v116
    %v119 = vadd.f32 %v114, %v118
    %s120 = sld [smem:[#allocation10 + $0x2]]
    %v121 = vld [vmem:[#allocation4 + $0x10] sm:$0x3f]
    %v122 = vstv %s120
    %v123 = vmul.f32 %v122, %v121
    %v124 = vadd.f32 %v119, %v123
    %s125 = sld [smem:[#allocation10 + $0x3]]
    %v126 = vld [vmem:[#allocation4 + $0x18] sm:$0x3f]
    %v127 = vstv %s125
    %v128 = vmul.f32 %v127, %v126
    %v129 = vadd.f32 %v124, %v128
    %s130 = sld [smem:[#allocation13]]
    %v131 = vstv %s130
    %v132 = vadd.f32 %v129, %v131
    %133 = vst [vmem:[#allocation16] sm:$0x3f] %v132
    %s134 = sld [smem:[#allocation10 + $0x4]]
    %v135 = vld [vmem:[#allocation4] sm:$0x3f]
    %v136 = vstv %s134
    %v137 = vmul.f32 %v136, %v135
    %s138 = sld [smem:[#allocation10 + $0x5]]
    %v139 = vld [vmem:[#allocation4 + $0x8] sm:$0x3f]
    %v140 = vstv %s138
    %v141 = vmul.f32 %v140, %v139
    %v142 = vadd.f32 %v137, %v141
    %s143 = sld [smem:[#allocation10 + $0x6]]
    %v144 = vld [vmem:[#allocation4 + $0x10] sm:$0x3f]
    %v145 = vstv %s143
    %v146 = vmul.f32 %v145, %v144
    %v147 = vadd.f32 %v142, %v146
    %s148 = sld [smem:[#allocation10 + $0x7]]
    %v149 = vld [vmem:[#allocation4 + $0x18] sm:$0x3f]
    %v150 = vstv %s148
    %v151 = vmul.f32 %v150, %v149
    %v152 = vadd.f32 %v147, %v151
    %s153 = sld [smem:[#allocation13 + $0x1]]
    %v154 = vstv %s153
    %v155 = vadd.f32 %v152, %v154
    %156 = vst [vmem:[#allocation16 + $0x8] sm:$0x3f] %v155
    %s157 = sld [smem:[#allocation10 + $0x8]]
    %v158 = vld [vmem:[#allocation4] sm:$0x3f]
    %v159 = vstv %s157
    %v160 = vmul.f32 %v159, %v158
    %s161 = sld [smem:[#allocation10 + $0x9]]
    %v162 = vld [vmem:[#allocation4 + $0x8] sm:$0x3f]
    %v163 = vstv %s161
    %v164 = vmul.f32 %v163, %v162
    %v165 = vadd.f32 %v160, %v164
    %s166 = sld [smem:[#allocation10 + $0xa]]
    %v167 = vld [vmem:[#allocation4 + $0x10] sm:$0x3f]
    %v168 = vstv %s166
    %v169 = vmul.f32 %v168, %v167
    %v170 = vadd.f32 %v165, %v169
    %s171 = sld [smem:[#allocation10 + $0xb]]
    %v172 = vld [vmem:[#allocation4 + $0x18] sm:$0x3f]
    %v173 = vstv %s171
    %v174 = vmul.f32 %v173, %v172
    %v175 = vadd.f32 %v170, %v174
    %s176 = sld [smem:[#allocation13 + $0x2]]
    %v177 = vstv %s176
    %v178 = vadd.f32 %v175, %v177
    %179 = vst [vmem:[#allocation16 + $0x10] sm:$0x3f] %v178
    %s180 = sld [smem:[#allocation10 + $0xc]]
    %v181 = vld [vmem:[#allocation4] sm:$0x3f]
    %v182 = vstv %s180
    %v183 = vmul.f32 %v182, %v181
    %s184 = sld [smem:[#allocation10 + $0xd]]
    %v185 = vld [vmem:[#allocation4 + $0x8] sm:$0x3f]
    %v186 = vstv %s184
    %v187 = vmul.f32 %v186, %v185
    %v188 = vadd.f32 %v183, %v187
    %s189 = sld [smem:[#allocation10 + $0xe]]
    %v190 = vld [vmem:[#allocation4 + $0x10] sm:$0x3f]
    %v191 = vstv %s189
    %v192 = vmul.f32 %v191, %v190
    %v193 = vadd.f32 %v188, %v192
    %s194 = sld [smem:[#allocation10 + $0xf]]
    %v195 = vld [vmem:[#allocation4 + $0x18] sm:$0x3f]
    %v196 = vstv %s194
    %v197 = vmul.f32 %v196, %v195
    %v198 = vadd.f32 %v193, %v197
    %s199 = sld [smem:[#allocation13 + $0x3]]
    %v200 = vstv %s199
    %v201 = vadd.f32 %v198, %v200
    %202 = vst [vmem:[#allocation16 + $0x18] sm:$0x3f] %v201
    %s203 = sld [smem:[#allocation10 + $0x10]]
    %v204 = vld [vmem:[#allocation4] sm:$0x3f]
    %v205 = vstv %s203
    %v206 = vmul.f32 %v205, %v204
    %s207 = sld [smem:[#allocation10 + $0x11]]
    %v208 = vld [vmem:[#allocation4 + $0x8] sm:$0x3f]
    %v209 = vstv %s207
    %v210 = vmul.f32 %v209, %v208
    %v211 = vadd.f32 %v206, %v210
    %s212 = sld [smem:[#allocation10 + $0x12]]
    %v213 = vld [vmem:[#allocation4 + $0x10] sm:$0x3f]
    %v214 = vstv %s212
    %v215 = vmul.f32 %v214, %v213
    %v216 = vadd.f32 %v211, %v215
    %s217 = sld [smem:[#allocation10 + $0x13]]
    %v218 = vld [vmem:[#allocation4 + $0x18] sm:$0x3f]
    %v219 = vstv %s217
    %v220 = vmul.f32 %v219, %v218
    %v221 = vadd.f32 %v216, %v220
    %s222 = sld [smem:[#allocation13 + $0x4]]
    %v223 = vstv %s222
    %v224 = vadd.f32 %v221, %v223
    %225 = vst [vmem:[#allocation16 + $0x20] sm:$0x3f] %v224
    %s226 = sld [smem:[#allocation10 + $0x14]]
    %v227 = vld [vmem:[#allocation4] sm:$0x3f]
    %v228 = vstv %s226
    %v229 = vmul.f32 %v228, %v227
    %s230 = sld [smem:[#allocation10 + $0x15]]
    %v231 = vld [vmem:[#allocation4 + $0x8] sm:$0x3f]
    %v232 = vstv %s230
    %v233 = vmul.f32 %v232, %v231
    %v234 = vadd.f32 %v229, %v233
    %s235 = sld [smem:[#allocation10 + $0x16]]
    %v236 = vld [vmem:[#allocation4 + $0x10] sm:$0x3f]
    %v237 = vstv %s235
    %v238 = vmul.f32 %v237, %v236
    %v239 = vadd.f32 %v234, %v238
    %s240 = sld [smem:[#allocation10 + $0x17]]
    %v241 = vld [vmem:[#allocation4 + $0x18] sm:$0x3f]
    %v242 = vstv %s240
    %v243 = vmul.f32 %v242, %v241
    %v244 = vadd.f32 %v239, %v243
    %s245 = sld [smem:[#allocation13 + $0x5]]
    %v246 = vstv %s245
    %v247 = vadd.f32 %v244, %v246
    %248 = vst [vmem:[#allocation16 + $0x28] sm:$0x3f] %v247
    %s249 = sld [smem:[#allocation10 + $0x18]]
    %v250 = vld [vmem:[#allocation4] sm:$0x3f]
    %v251 = vstv %s249
    %v252 = vmul.f32 %v251, %v250
    %s253 = sld [smem:[#allocation10 + $0x19]]
    %v254 = vld [vmem:[#allocation4 + $0x8] sm:$0x3f]
    %v255 = vstv %s253
    %v256 = vmul.f32 %v255, %v254
    %v257 = vadd.f32 %v252, %v256
    %s258 = sld [smem:[#allocation10 + $0x1a]]
    %v259 = vld [vmem:[#allocation4 + $0x10] sm:$0x3f]
    %v260 = vstv %s258
    %v261 = vmul.f32 %v260, %v259
    %v262 = vadd.f32 %v257, %v261
    %s263 = sld [smem:[#allocation10 + $0x1b]]
    %v264 = vld [vmem:[#allocation4 + $0x18] sm:$0x3f]
    %v265 = vstv %s263
    %v266 = vmul.f32 %v265, %v264
    %v267 = vadd.f32 %v262, %v266
    %s268 = sld [smem:[#allocation13 + $0x6]]
    %v269 = vstv %s268
    %v270 = vadd.f32 %v267, %v269
    %271 = vst [vmem:[#allocation16 + $0x30] sm:$0x3f] %v270
    %s272 = sld [smem:[#allocation10 + $0x1c]]
    %v273 = vld [vmem:[#allocation4] sm:$0x3f]
    %v274 = vstv %s272
    %v275 = vmul.f32 %v274, %v273
    %s276 = sld [smem:[#allocation10 + $0x1d]]
    %v277 = vld [vmem:[#allocation4 + $0x8] sm:$0x3f]
    %v278 = vstv %s276
    %v279 = vmul.f32 %v278, %v277
    %v280 = vadd.f32 %v275, %v279
    %s281 = sld [smem:[#allocation10 + $0x1e]]
    %v282 = vld [vmem:[#allocation4 + $0x10] sm:$0x3f]
    %v283 = vstv %s281
    %v284 = vmul.f32 %v283, %v282
    %v285 = vadd.f32 %v280, %v284
    %s286 = sld [smem:[#allocation10 + $0x1f]]
    %v287 = vld [vmem:[#allocation4 + $0x18] sm:$0x3f]
    %v288 = vstv %s286
    %v289 = vmul.f32 %v288, %v287
    %v290 = vadd.f32 %v285, %v289
    %s291 = sld [smem:[#allocation13 + $0x7]]
    %v292 = vstv %s291
    %v293 = vadd.f32 %v290, %v292
    %294 = vst [vmem:[#allocation16 + $0x38] sm:$0x3f] %v293
    %s295 = sld [smem:[#allocation11]]
    %v296 = vld [vmem:[#allocation8] sm:$0x3f]
    %v297 = vstv %s295
    %v298 = vmul.f32 %v297, %v296
    %s299 = sld [smem:[#allocation11 + $0x1]]
    %v300 = vld [vmem:[#allocation8 + $0x8] sm:$0x3f]
    %v301 = vstv %s299
    %v302 = vmul.f32 %v301, %v300
    %v303 = vadd.f32 %v298, %v302
    %s304 = sld [smem:[#allocation11 + $0x2]]
    %v305 = vld [vmem:[#allocation8 + $0x10] sm:$0x3f]
    %v306 = vstv %s304
    %v307 = vmul.f32 %v306, %v305
    %v308 = vadd.f32 %v303, %v307
    %s309 = sld [smem:[#allocation14]]
    %v310 = vstv %s309
    %v311 = vadd.f32 %v308, %v310
    %312 = vst [vmem:[#allocation17] sm:$0x3f] %v311
    %s313 = sld [smem:[#allocation11 + $0x3]]
    %v314 = vld [vmem:[#allocation8] sm:$0x3f]
    %v315 = vstv %s313
    %v316 = vmul.f32 %v315, %v314
    %s317 = sld [smem:[#allocation11 + $0x4]]
    %v318 = vld [vmem:[#allocation8 + $0x8] sm:$0x3f]
    %v319 = vstv %s317
    %v320 = vmul.f32 %v319, %v318
    %v321 = vadd.f32 %v316, %v320
    %s322 = sld [smem:[#allocation11 + $0x5]]
    %v323 = vld [vmem:[#allocation8 + $0x10] sm:$0x3f]
    %v324 = vstv %s322
    %v325 = vmul.f32 %v324, %v323
    %v326 = vadd.f32 %v321, %v325
    %s327 = sld [smem:[#allocation14 + $0x1]]
    %v328 = vstv %s327
    %v329 = vadd.f32 %v326, %v328
    %330 = vst [vmem:[#allocation17 + $0x8] sm:$0x3f] %v329
    %s331 = sld [smem:[#allocation11 + $0x6]]
    %v332 = vld [vmem:[#allocation8] sm:$0x3f]
    %v333 = vstv %s331
    %v334 = vmul.f32 %v333, %v332
    %s335 = sld [smem:[#allocation11 + $0x7]]
    %v336 = vld [vmem:[#allocation8 + $0x8] sm:$0x3f]
    %v337 = vstv %s335
    %v338 = vmul.f32 %v337, %v336
    %v339 = vadd.f32 %v334, %v338
    %s340 = sld [smem:[#allocation11 + $0x8]]
    %v341 = vld [vmem:[#allocation8 + $0x10] sm:$0x3f]
    %v342 = vstv %s340
    %v343 = vmul.f32 %v342, %v341
    %v344 = vadd.f32 %v339, %v343
    %s345 = sld [smem:[#allocation14 + $0x2]]
    %v346 = vstv %s345
    %v347 = vadd.f32 %v344, %v346
    %348 = vst [vmem:[#allocation17 + $0x10] sm:$0x3f] %v347
    %s349 = sld [smem:[#allocation11 + $0x9]]
    %v350 = vld [vmem:[#allocation8] sm:$0x3f]
    %v351 = vstv %s349
    %v352 = vmul.f32 %v351, %v350
    %s353 = sld [smem:[#allocation11 + $0xa]]
    %v354 = vld [vmem:[#allocation8 + $0x8] sm:$0x3f]
    %v355 = vstv %s353
    %v356 = vmul.f32 %v355, %v354
    %v357 = vadd.f32 %v352, %v356
    %s358 = sld [smem:[#allocation11 + $0xb]]
    %v359 = vld [vmem:[#allocation8 + $0x10] sm:$0x3f]
    %v360 = vstv %s358
    %v361 = vmul.f32 %v360, %v359
    %v362 = vadd.f32 %v357, %v361
    %s363 = sld [smem:[#allocation14 + $0x3]]
    %v364 = vstv %s363
    %v365 = vadd.f32 %v362, %v364
    %366 = vst [vmem:[#allocation17 + $0x18] sm:$0x3f] %v365
    %s367 = sld [smem:[#allocation11 + $0xc]]
    %v368 = vld [vmem:[#allocation8] sm:$0x3f]
    %v369 = vstv %s367
    %v370 = vmul.f32 %v369, %v368
    %s371 = sld [smem:[#allocation11 + $0xd]]
    %v372 = vld [vmem:[#allocation8 + $0x8] sm:$0x3f]
    %v373 = vstv %s371
    %v374 = vmul.f32 %v373, %v372
    %v375 = vadd.f32 %v370, %v374
    %s376 = sld [smem:[#allocation11 + $0xe]]
    %v377 = vld [vmem:[#allocation8 + $0x10] sm:$0x3f]
    %v378 = vstv %s376
    %v379 = vmul.f32 %v378, %v377
    %v380 = vadd.f32 %v375, %v379
    %s381 = sld [smem:[#allocation14 + $0x4]]
    %v382 = vstv %s381
    %v383 = vadd.f32 %v380, %v382
    %384 = vst [vmem:[#allocation17 + $0x20] sm:$0x3f] %v383
    %s385 = sld [smem:[#allocation11 + $0xf]]
    %v386 = vld [vmem:[#allocation8] sm:$0x3f]
    %v387 = vstv %s385
    %v388 = vmul.f32 %v387, %v386
    %s389 = sld [smem:[#allocation11 + $0x10]]
    %v390 = vld [vmem:[#allocation8 + $0x8] sm:$0x3f]
    %v391 = vstv %s389
    %v392 = vmul.f32 %v391, %v390
    %v393 = vadd.f32 %v388, %v392
    %s394 = sld [smem:[#allocation11 + $0x11]]
    %v395 = vld [vmem:[#allocation8 + $0x10] sm:$0x3f]
    %v396 = vstv %s394
    %v397 = vmul.f32 %v396, %v395
    %v398 = vadd.f32 %v393, %v397
    %s399 = sld [smem:[#allocation14 + $0x5]]
    %v400 = vstv %s399
    %v401 = vadd.f32 %v398, %v400
    %402 = vst [vmem:[#allocation17 + $0x28] sm:$0x3f] %v401
    %s403 = sld [smem:[#allocation2]]
    %v404 = vld [vmem:[%s2] sm:$0x3f]
    %v405 = vstv %s403
    %v406 = vmul.f32 %v405, %v404
    %s407 = sld [smem:[#allocation3]]
    %v408 = vstv %s407
    %v409 = vadd.f32 %v406, %v408
    %410 = vst [vmem:[#allocation19] sm:$0x3f] %v409
    // Predicated region
    $region62: #{tpu_custom_call.1} parent=1 // pred_check
      _
    $region63: #{tpu_custom_call.1} parent=1 // pred_check_branch
      %412 = sbr.rel (0) target = $region65
    $region64: #{tpu_custom_call.1} parent=1 // pred_region
      %s414 = ssub.s32 1024, 1024
      %415 = vsyncadd [#allocation6], %s414
      %s417 = sshll.u32 [#allocation16], 4
      %s418 = int_to_ptr.vmem [resolvable:$true] %s417
      %420 = dma.vmem_to_hbm [thread:$0]  %s418, 1024, %s9, [#allocation6]
    $region65: #{tpu_custom_call.1} parent=1 // pred_fallthru
      _
    // Predicated region
    $region66: #{tpu_custom_call.1} parent=1 // pred_check
      _
    $region67: #{tpu_custom_call.1} parent=1 // pred_check_branch
      %422 = sbr.rel (0) target = $region69
    $region68: #{tpu_custom_call.1} parent=1 // pred_region
      %s424 = ssub.s32 768, 768
      %425 = vsyncadd [#allocation18], %s424
      %s427 = sshll.u32 [#allocation17], 4
      %s428 = int_to_ptr.vmem [resolvable:$true] %s427
      %430 = dma.vmem_to_hbm [thread:$0]  %s428, 768, %s10, [#allocation18]
    $region69: #{tpu_custom_call.1} parent=1 // pred_fallthru
      _
    // Predicated region
    $region70: #{tpu_custom_call.1} parent=1 // pred_check
      _
    $region71: #{tpu_custom_call.1} parent=1 // pred_check_branch
      %432 = sbr.rel (0) target = $region73
    $region72: #{tpu_custom_call.1} parent=1 // pred_region
      %s434 = ssub.s32 128, 128
      %435 = vsyncadd [#allocation18], %s434
      %s437 = sshll.u32 [#allocation19], 4
      %s438 = int_to_ptr.vmem [resolvable:$true] %s437
      %440 = dma.vmem_to_hbm [thread:$0]  %s438, 128, %s11, [#allocation18]
    $region73: #{tpu_custom_call.1} parent=1 // pred_fallthru
      _
    // Predicated region
    $region74: #{tpu_custom_call.1} parent=1 // pred_check
      _
    $region75: #{tpu_custom_call.1} parent=1 // pred_check_branch
      %442 = sbr.rel (0) target = $region77
    $region76: #{tpu_custom_call.1} parent=1 // pred_region
      %443 = dma.done [#allocation6], 1024
    $region77: #{tpu_custom_call.1} parent=1 // pred_fallthru
      _
    // Predicated region
    $region78: #{tpu_custom_call.1} parent=1 // pred_check
      _
    $region79: #{tpu_custom_call.1} parent=1 // pred_check_branch
      %445 = sbr.rel (0) target = $region81
    $region80: #{tpu_custom_call.1} parent=1 // pred_region
      %446 = dma.done [#allocation18], 768
    $region81: #{tpu_custom_call.1} parent=1 // pred_fallthru
      _
    // Predicated region
    $region82: #{tpu_custom_call.1} parent=1 // pred_check
      _
    $region83: #{tpu_custom_call.1} parent=1 // pred_check_branch
      %448 = sbr.rel (0) target = $region85
    $region84: #{tpu_custom_call.1} parent=1 // pred_region
      %449 = dma.done [#allocation18], 128
    $region85: #{tpu_custom_call.1} parent=1 // pred_fallthru
      _
    %450 = vsyncpa [#allocation5], 1
    %451 = vsyncpa [#allocation9], 1
    %452 = vsyncpa [#allocation6], 1
    %453 = vsyncpa [#allocation18], 1
    %454 = vsyncpa [#allocation7], 1
    %455 = vsyncpa [#allocation12], 1
    %456 = vsyncpa [#allocation15], 1

</llo_original>
